<compile_context>
chip_gen: v6e
topology: v6e:2x2x1
jax: 0.10.0
libtpu: 0.0.40
codegen_flags: <defaults>
</compile_context>

<pallas_src>
import jax
import jax.numpy as jnp
from jax.experimental import pallas as pl
from jax.experimental.pallas import tpu as pltpu

IN_DIM, HID_DIM, OUT_DIM = 13, 50, 4

# Per-row padded-f32 VMEM footprint in the feature-major layout:
#   x_T: 13 -> 16 sublanes, h: 50 -> 56 sublanes, o_T: 4 -> 8 sublanes, 4 B each.
_BYTES_PER_ROW_F32 = (16 + 56 + 8) * 4


def mlp_kernel(xt_ref, w1t_ref, b1_ref, w2t_ref, b2_ref, ot_ref):
    # Layer 1 (feature-major): (HID, IN) @ (IN, tb) -> (HID, tb); batch lives on lanes.
    h = jnp.dot(w1t_ref[...], xt_ref[...], preferred_element_type=jnp.float32)
    h = jax.nn.sigmoid(h + b1_ref[...])
    # Layer 2: (OUT, HID) @ (HID, tb) -> (OUT, tb). Lane-dense (unmasked) store.
    ot_ref[...] = jnp.dot(w2t_ref[...], h, preferred_element_type=jnp.float32) + b2_ref[...]


def _vmem_capacity_bytes():
    """Physical VMEM per core (128 MiB on v5e/v6e, 64 MiB on v7x); conservative fallback."""
    try:
        cap = int(getattr(pltpu.get_tpu_info(), "vmem_capacity_bytes"))
        if cap > 0:
            return cap
    except Exception:
        pass
    return 64 * 1024 * 1024


def _vmem_limit_bytes():
    # Leave generous headroom: 32 MiB on v7x, 64 MiB on v5e/v6e.
    return min(_vmem_capacity_bytes() // 2, 64 * 1024 * 1024)


def _default_small_path_threshold(vmem_limit):
    # Rows that comfortably fit the single-shot (no-grid) VMEM path with ~2x headroom.
    rows = (vmem_limit // 2) // _BYTES_PER_ROW_F32
    return max(1024, (rows // 128) * 128)


def _forward_small(xt, w1t, b1c, w2t, b2c, vmem_limit):
    """Whole problem resident in VMEM: no grid, no pipelining plumbing, one DMA each way."""
    B = xt.shape[1]
    vmem = pl.BlockSpec(memory_space=pltpu.MemorySpace.VMEM)
    return pl.pallas_call(
        mlp_kernel,
        out_shape=jax.ShapeDtypeStruct((OUT_DIM, B), jnp.float32),
        in_specs=[vmem, vmem, vmem, vmem, vmem],
        out_specs=vmem,
        compiler_params=pltpu.CompilerParams(vmem_limit_bytes=vmem_limit),
    )(xt, w1t, b1c, w2t, b2c)


def _forward_tiled(xt, w1t, b1c, w2t, b2c, tb, vmem_limit):
    """Batch-tiled path for very large B: x/out tiles stream, weights stay VMEM-resident."""
    B = xt.shape[1]
    grid = (pl.cdiv(B, tb),)
    return pl.pallas_call(
        mlp_kernel,
        out_shape=jax.ShapeDtypeStruct((OUT_DIM, B), jnp.float32),
        grid=grid,
        in_specs=[
            pl.BlockSpec((IN_DIM, tb), lambda i: (0, i)),        # streamed contiguous x tile
            pl.BlockSpec((HID_DIM, IN_DIM), lambda i: (0, 0)),   # resident weights
            pl.BlockSpec((HID_DIM, 1), lambda i: (0, 0)),
            pl.BlockSpec((OUT_DIM, HID_DIM), lambda i: (0, 0)),
            pl.BlockSpec((OUT_DIM, 1), lambda i: (0, 0)),
        ],
        out_specs=pl.BlockSpec((OUT_DIM, tb), lambda i: (0, i)),  # lane-dense output tile
        compiler_params=pltpu.CompilerParams(
            # Batch tiles are independent -> shard grid steps across TensorCores (v7x).
            dimension_semantics=("parallel",),
            vmem_limit_bytes=vmem_limit,
        ),
    )(xt, w1t, b1c, w2t, b2c)


def network_2_forward(x, w1, b1, w2, b2, *, batch_tile=8192, small_path_threshold=None):
    """x: (B, 13) row-major; w1: (13, 50); b1: (50,)/(1,50); w2: (50, 4); b2: (4,)/(1,4)."""
    B = x.shape[0]
    # Layout plumbing (cheap): batch onto lanes, weights as (out, in), biases as columns.
    xt = jnp.asarray(x, jnp.float32).T                     # (13, B)
    w1t = jnp.asarray(w1, jnp.float32).T                   # (50, 13)
    b1c = jnp.asarray(b1, jnp.float32).reshape(HID_DIM, 1)  # (50, 1)
    w2t = jnp.asarray(w2, jnp.float32).T                   # (4, 50)
    b2c = jnp.asarray(b2, jnp.float32).reshape(OUT_DIM, 1)  # (4, 1)

    vmem_limit = _vmem_limit_bytes()
    if small_path_threshold is None:
        small_path_threshold = _default_small_path_threshold(vmem_limit)

    if B <= small_path_threshold:
        out_t = _forward_small(xt, w1t, b1c, w2t, b2c, vmem_limit)
    else:
        out_t = _forward_tiled(xt, w1t, b1c, w2t, b2c, batch_tile, vmem_limit)
    return out_t.T                                          # back to (B, 4)


def init_params(key):
    # Deterministic init mimicking PyTorch Linear default: U(-1/sqrt(fan_in), 1/sqrt(fan_in)).
    k1, k2, k3, k4 = jax.random.split(key, 4)
    bound1 = 1.0 / jnp.sqrt(jnp.float32(IN_DIM))
    bound2 = 1.0 / jnp.sqrt(jnp.float32(HID_DIM))
    w1 = jax.random.uniform(k1, (IN_DIM, HID_DIM), jnp.float32, -bound1, bound1)
    b1 = jax.random.uniform(k2, (1, HID_DIM), jnp.float32, -bound1, bound1)
    w2 = jax.random.uniform(k3, (HID_DIM, OUT_DIM), jnp.float32, -bound2, bound2)
    b2 = jax.random.uniform(k4, (1, OUT_DIM), jnp.float32, -bound2, bound2)
    return w1, b1, w2, b2


def reference_forward(x, w1, b1, w2, b2):
    h = jax.nn.sigmoid(x @ w1 + b1)
    return h @ w2 + b2


if __name__ == "__main__":
    key = jax.random.PRNGKey(0)
    kx, kx_big, kp = jax.random.split(key, 3)
    w1, b1, w2, b2 = init_params(kp)

    # Small batch -> single-shot VMEM (no-grid) path.
    B_small = 8
    x_small = jax.random.normal(kx, (B_small, IN_DIM), jnp.float32)
    out_small = jax.block_until_ready(network_2_forward(x_small, w1, b1, w2, b2))
    ref_small = reference_forward(x_small, w1, b1, w2, b2)
    assert out_small.shape == (B_small, OUT_DIM)
    assert jnp.allclose(out_small, ref_small, atol=1e-5, rtol=1e-5)

    # Force the batch-tiled grid path at a small scale (grid=(2,), tb=1024) to exercise it.
    B_big = 2048
    x_big = jax.random.normal(kx_big, (B_big, IN_DIM), jnp.float32)
    out_big = jax.block_until_ready(
        network_2_forward(x_big, w1, b1, w2, b2, batch_tile=1024, small_path_threshold=0)
    )
    ref_big = reference_forward(x_big, w1, b1, w2, b2)
    assert out_big.shape == (B_big, OUT_DIM)
    assert jnp.allclose(out_big, ref_big, atol=1e-5, rtol=1e-5)

    print("KERNEL_OK")
</pallas_src>

<mosaic_0001>
module attributes {stable_mosaic.version = 11 : i64} {
  func.func @mlp_kernel(%arg0: memref<13x8xf32, #tpu.memory_space<vmem>>, %arg1: memref<50x13xf32, #tpu.memory_space<vmem>>, %arg2: memref<50x1xf32, #tpu.memory_space<vmem>>, %arg3: memref<4x50xf32, #tpu.memory_space<vmem>>, %arg4: memref<4x1xf32, #tpu.memory_space<vmem>>, %arg5: memref<4x8xf32, #tpu.memory_space<vmem>>) attributes {dimension_semantics = [], scalar_prefetch = 0 : i64, scratch_operands = 0 : i64, tpu.core_type = #tpu.core_type<tc>} {
    %c0 = arith.constant 0 : index
    %c0_0 = arith.constant 0 : index
    %0 = vector.load %arg1[%c0, %c0_0] : memref<50x13xf32, #tpu.memory_space<vmem>>, vector<50x13xf32>
    %c0_1 = arith.constant 0 : index
    %c0_2 = arith.constant 0 : index
    %1 = vector.load %arg0[%c0_1, %c0_2] : memref<13x8xf32, #tpu.memory_space<vmem>>, vector<13x8xf32>
    %cst = arith.constant dense<0.000000e+00> : vector<50x8xf32>
    %2 = tpu.matmul %0, %1, %cst {dimension_numbers = #tpu.dot_dimension_numbers<[1], [0], [0], [1], [0, 0, 1, 1], [], []>} : vector<50x13xf32>, vector<13x8xf32>, vector<50x8xf32> -> vector<50x8xf32>
    %c0_3 = arith.constant 0 : index
    %c0_4 = arith.constant 0 : index
    %3 = vector.load %arg2[%c0_3, %c0_4] : memref<50x1xf32, #tpu.memory_space<vmem>>, vector<50x1xf32>
    %4 = vector.broadcast %3 : vector<50x1xf32> to vector<50x8xf32>
    %5 = arith.addf %2, %4 : vector<50x8xf32>
    %6 = arith.negf %5 : vector<50x8xf32>
    %7 = math.exp %6 : vector<50x8xf32>
    %cst_5 = arith.constant 1.000000e+00 : f32
    %8 = vector.broadcast %cst_5 : f32 to vector<50x8xf32>
    %9 = arith.addf %8, %7 : vector<50x8xf32>
    %10 = arith.divf %8, %9 : vector<50x8xf32>
    %c0_6 = arith.constant 0 : index
    %c0_7 = arith.constant 0 : index
    %11 = vector.load %arg3[%c0_6, %c0_7] : memref<4x50xf32, #tpu.memory_space<vmem>>, vector<4x50xf32>
    %cst_8 = arith.constant dense<0.000000e+00> : vector<4x8xf32>
    %12 = tpu.matmul %11, %10, %cst_8 {dimension_numbers = #tpu.dot_dimension_numbers<[1], [0], [0], [1], [0, 0, 1, 1], [], []>} : vector<4x50xf32>, vector<50x8xf32>, vector<4x8xf32> -> vector<4x8xf32>
    %c0_9 = arith.constant 0 : index
    %c0_10 = arith.constant 0 : index
    %13 = vector.load %arg4[%c0_9, %c0_10] : memref<4x1xf32, #tpu.memory_space<vmem>>, vector<4x1xf32>
    %14 = vector.broadcast %13 : vector<4x1xf32> to vector<4x8xf32>
    %15 = arith.addf %12, %14 : vector<4x8xf32>
    %c0_11 = arith.constant 0 : index
    %c0_12 = arith.constant 0 : index
    %16 = vector.load %arg5[%c0_11, %c0_12] : memref<4x8xf32, #tpu.memory_space<vmem>>, vector<4x8xf32>
    tpu.vector_store %arg5[%c0_11, %c0_12], %15 {strides = array<i32>} : memref<4x8xf32, #tpu.memory_space<vmem>>, vector<4x8xf32>,
    return
  }
}

</mosaic_0001>

<llo_original>
// kernel: tpu_custom_call.1
$region0: #{tpu_custom_call.1}
  #allocation0 [shape = 'u32[]', space=smem, size = 0x4, offset = 0x4, fixed_abs, tag = 'smem constant byte address 0x4 - core index']
  #allocation1 [shape = 'u32[144,128]{1,0:T(1,128)}', space=vmem, size = 0x12000, scoped, tag = 'internal scratch']
  %s0 = inlined_call_operand.vmem [shape: f32[13,8], index: 0, kind: input, shape index: {}]
  %s1 = inlined_call_operand.vmem [shape: f32[50,13], index: 1, kind: input, shape index: {}]
  %s2 = inlined_call_operand.vmem [shape: f32[50,1], index: 2, kind: input, shape index: {}]
  %s3 = inlined_call_operand.vmem [shape: f32[4,50], index: 3, kind: input, shape index: {}]
  %s4 = inlined_call_operand.vmem [shape: f32[4,1], index: 4, kind: input, shape index: {}]
  %s5 = inlined_call_operand.hbm [shape: f32[4,8], index: 5, kind: output, shape index: {}]
  %s6 = sld [smem:[#allocation0]]
  $region30: #{tpu_custom_call.1} parent=0
    _
  %s8 = ssub.s32 1, %s6
  %s9 = scalar_select 0, %s8, %s6
  $region1: #{tpu_custom_call.1} parent=0
    #allocation2 [shape = 'u8[2048]{0}', space=vmem, size = 0x800, scoped, tag = 'output window, operand 0, single buffered']
    #allocation3 [shape = 's32[1]{0}', space=sflag, size = 0x4, scoped, tag = 'scoped memory for tpu_custom_call.1']
    %10 = vsyncpa [#allocation3], 0
    // Predicated region
    $region2: #{tpu_custom_call.1} parent=1 // pred_check
      _
    $region3: #{tpu_custom_call.1} parent=1 // pred_check_branch
      %12 = sbr.rel (0) target = $region5
    $region4: #{tpu_custom_call.1} parent=1 // pred_region
      _
    $region5: #{tpu_custom_call.1} parent=1 // pred_fallthru
      _
    // Predicated region
    $region6: #{tpu_custom_call.1} parent=1 // pred_check
      _
    $region7: #{tpu_custom_call.1} parent=1 // pred_check_branch
      %14 = sbr.rel (0) target = $region9
    $region8: #{tpu_custom_call.1} parent=1 // pred_region
      _
    $region9: #{tpu_custom_call.1} parent=1 // pred_fallthru
      _
    // Predicated region
    $region10: #{tpu_custom_call.1} parent=1 // pred_check
      _
    $region11: #{tpu_custom_call.1} parent=1 // pred_check_branch
      %16 = sbr.rel (0) target = $region13
    $region12: #{tpu_custom_call.1} parent=1 // pred_region
      _
    $region13: #{tpu_custom_call.1} parent=1 // pred_fallthru
      _
    // Predicated region
    $region14: #{tpu_custom_call.1} parent=1 // pred_check
      _
    $region15: #{tpu_custom_call.1} parent=1 // pred_check_branch
      %18 = sbr.rel (0) target = $region17
    $region16: #{tpu_custom_call.1} parent=1 // pred_region
      _
    $region17: #{tpu_custom_call.1} parent=1 // pred_fallthru
      _
    // Predicated region
    $region18: #{tpu_custom_call.1} parent=1 // pred_check
      _
    $region19: #{tpu_custom_call.1} parent=1 // pred_check_branch
      %20 = sbr.rel (0) target = $region21
    $region20: #{tpu_custom_call.1} parent=1 // pred_region
      _
    $region21: #{tpu_custom_call.1} parent=1 // pred_fallthru
      _
    %v21 = vld [vmem:[%s1] sm:$0xff]
    %v22 = vld [vmem:[%s1 + $0x8] sm:$0xff]
    %v23 = vld [vmem:[%s1 + $0x10] sm:$0xff]
    %v24 = vld [vmem:[%s1 + $0x18] sm:$0xff]
    %v25 = vld [vmem:[%s1 + $0x20] sm:$0xff]
    %v26 = vld [vmem:[%s1 + $0x28] sm:$0xff]
    %v27 = vld [vmem:[%s1 + $0x30] sm:$0x3]
    %v28 = vld [vmem:[%s0] sm:$0xff]
    %v29 = vld [vmem:[%s0 + $0x8] sm:$0x1f]
    %v30 = vld [vmem:[%s2] sm:$0xff]
    %v31 = vld [vmem:[%s2 + $0x8] sm:$0xff]
    %v32 = vld [vmem:[%s2 + $0x10] sm:$0xff]
    %v33 = vld [vmem:[%s2 + $0x18] sm:$0xff]
    %v34 = vld [vmem:[%s2 + $0x20] sm:$0xff]
    %v35 = vld [vmem:[%s2 + $0x28] sm:$0xff]
    %v36 = vld [vmem:[%s2 + $0x30] sm:$0x3]
    %38 = vset.pattern.permute.xlu0 0
    %39 = vperm.xlu0 %38, %v30
    %v40 = vpop.permute.xlu0 %39
    %43 = vset.pattern.permute.xlu0 0
    %44 = vperm.xlu0 %43, %v31
    %v45 = vpop.permute.xlu0 %44
    %48 = vset.pattern.permute.xlu0 0
    %49 = vperm.xlu0 %48, %v32
    %v50 = vpop.permute.xlu0 %49
    %53 = vset.pattern.permute.xlu0 0
    %54 = vperm.xlu0 %53, %v33
    %v55 = vpop.permute.xlu0 %54
    %58 = vset.pattern.permute.xlu0 0
    %59 = vperm.xlu0 %58, %v34
    %v60 = vpop.permute.xlu0 %59
    %63 = vset.pattern.permute.xlu0 0
    %64 = vperm.xlu0 %63, %v35
    %v65 = vpop.permute.xlu0 %64
    %68 = vset.pattern.permute.xlu0 0
    %69 = vperm.xlu0 %68, %v36
    %v70 = vpop.permute.xlu0 %69
    %vm72 = vcmask 105472
    %v74 = vsel %vm72, %v21, 0
    %v77 = vsel %vm72, %v22, 0
    %v80 = vsel %vm72, %v23, 0
    %v83 = vsel %vm72, %v24, 0
    %v86 = vsel %vm72, %v25, 0
    %v89 = vsel %vm72, %v26, 0
    %v92 = vsel %vm72, %v27, 0
    %vm94 = vcmask 1044480
    %v96 = vsel %vm94, %v29, 0
    %98 = vmatprep.subr.mxu0 0.0
    %99 = vmatpush1.msra.mxu0 0.0
    %100 = vmatprep.subr.mxu0 0.0
    %101 = vmatpush1.msra.mxu0 0.0
    %102 = vmatprep.subr.mxu0 0.0
    %103 = vmatpush1.msra.mxu0 0.0
    %104 = vmatprep.subr.mxu0 0.0
    %105 = vmatpush1.msra.mxu0 0.0
    %106 = vmatprep.subr.mxu0 0.0
    %107 = vmatpush1.msra.mxu0 0.0
    %108 = vmatprep.subr.mxu0 0.0
    %109 = vmatpush1.msra.mxu0 0.0
    %110 = vmatprep.subr.mxu0 0.0
    %111 = vmatpush1.msra.mxu0 0.0
    %112 = vmatprep.subr.mxu0 0.0
    %113 = vmatpush1.msra.mxu0 0.0
    %114 = vmatprep.subr.mxu0 0.0
    %115 = vmatpush1.msra.mxu0 0.0
    %116 = vmatprep.subr.mxu0 0.0
    %117 = vmatpush1.msra.mxu0 0.0
    %118 = vmatprep.subr.mxu0 0.0
    %119 = vmatpush1.msra.mxu0 0.0
    %120 = vmatprep.subr.mxu0 0.0
    %121 = vmatpush1.msra.mxu0 0.0
    %122 = vmatprep.subr.mxu0 0.0
    %123 = vmatpush1.msra.mxu0 0.0
    %124 = vmatprep.subr.mxu0 0.0
    %125 = vmatpush1.msra.mxu0 0.0
    %126 = vmatprep.subr.mxu0 0.0
    %127 = vmatpush1.msra.mxu0 %v96
    %128 = vmatprep.subr.mxu0 0.0
    %129 = vmatpush1.msra.mxu0 %v28
    %130 = vmatprep.subr.mxu0 0.0
    %131 = vmatpush2.msra.mxu0 0.0
    %132 = vmatprep.subr.mxu0 0.0
    %133 = vmatpush2.msra.mxu0 0.0
    %134 = vmatprep.subr.mxu0 0.0
    %135 = vmatpush2.msra.mxu0 0.0
    %136 = vmatprep.subr.mxu0 0.0
    %137 = vmatpush2.msra.mxu0 0.0
    %138 = vmatprep.subr.mxu0 0.0
    %139 = vmatpush2.msra.mxu0 0.0
    %140 = vmatprep.subr.mxu0 0.0
    %141 = vmatpush2.msra.mxu0 0.0
    %142 = vmatprep.subr.mxu0 0.0
    %143 = vmatpush2.msra.mxu0 0.0
    %144 = vmatprep.subr.mxu0 0.0
    %145 = vmatpush2.msra.mxu0 0.0
    %146 = vmatprep.subr.mxu0 0.0
    %147 = vmatpush2.msra.mxu0 0.0
    %148 = vmatprep.subr.mxu0 0.0
    %149 = vmatpush2.msra.mxu0 0.0
    %150 = vmatprep.subr.mxu0 0.0
    %151 = vmatpush2.msra.mxu0 0.0
    %152 = vmatprep.subr.mxu0 0.0
    %153 = vmatpush2.msra.mxu0 0.0
    %154 = vmatprep.subr.mxu0 0.0
    %155 = vmatpush2.msra.mxu0 0.0
    %156 = vmatprep.subr.mxu0 0.0
    %157 = vmatpush2.msra.mxu0 0.0
    %158 = vmatprep.subr.mxu0 0.0
    %159 = vmatpush2.msra.mxu0 0.0
    %160 = vmatprep.subr.mxu0 0.0
    %161 = vmatpush2.msra.mxu0 0.0
    %162 = vmatprep.mubr.f32.mxu0 0.0
    %163 = vmatmul.mubr.f32.gmra.mxu0 %v74
    %v164 = vpop.f32.mrf.mxu0
    %v165 = vadd.f32 %v40, %v164
    %v166 = vpop.f32.mrf.mxu0
    %167 = vmatprep.mubr.f32.mxu0 0.0
    %168 = vmatmul.mubr.f32.gmra.mxu0 %v77
    %v169 = vpop.f32.mrf.mxu0
    %v170 = vadd.f32 %v45, %v169
    %v171 = vpop.f32.mrf.mxu0
    %172 = vmatprep.mubr.f32.mxu0 0.0
    %173 = vmatmul.mubr.f32.gmra.mxu0 %v80
    %v174 = vpop.f32.mrf.mxu0
    %v175 = vadd.f32 %v50, %v174
    %v176 = vpop.f32.mrf.mxu0
    %177 = vmatprep.mubr.f32.mxu0 0.0
    %178 = vmatmul.mubr.f32.gmra.mxu0 %v83
    %v179 = vpop.f32.mrf.mxu0
    %v180 = vadd.f32 %v55, %v179
    %v181 = vpop.f32.mrf.mxu0
    %182 = vmatprep.mubr.f32.mxu0 0.0
    %183 = vmatmul.mubr.f32.gmra.mxu0 %v86
    %v184 = vpop.f32.mrf.mxu0
    %v185 = vadd.f32 %v60, %v184
    %v186 = vpop.f32.mrf.mxu0
    %187 = vmatprep.mubr.f32.mxu0 0.0
    %188 = vmatmul.mubr.f32.gmra.mxu0 %v89
    %v189 = vpop.f32.mrf.mxu0
    %v190 = vadd.f32 %v65, %v189
    %v191 = vpop.f32.mrf.mxu0
    %192 = vmatprep.mubr.f32.mxu0 0.0
    %193 = vmatmul.mubr.f32.gmra.mxu0 %v92
    %v194 = vpop.f32.mrf.mxu0
    %v195 = vadd.f32 %v70, %v194
    %v196 = vpop.f32.mrf.mxu0
    %197 = vdwg.mxu0
    %v198 = vxor.u32 %v165, 2147483648
    %v199 = vxor.u32 %v170, 2147483648
    %v200 = vxor.u32 %v175, 2147483648
    %v201 = vxor.u32 %v180, 2147483648
    %v202 = vxor.u32 %v185, 2147483648
    %v203 = vxor.u32 %v190, 2147483648
    %v204 = vxor.u32 %v195, 2147483648
    %v205 = vmul.f32 %v198, 1.442695
    %v206 = vpow.pop %v205
    %v207 = vmul.f32 %v199, 1.442695
    %v208 = vpow.pop %v207
    %v209 = vmul.f32 %v200, 1.442695
    %v210 = vpow.pop %v209
    %v211 = vmul.f32 %v201, 1.442695
    %v212 = vpow.pop %v211
    %v213 = vmul.f32 %v202, 1.442695
    %v214 = vpow.pop %v213
    %v215 = vmul.f32 %v203, 1.442695
    %v216 = vpow.pop %v215
    %v217 = vmul.f32 %v204, 1.442695
    %v218 = vpow.pop %v217
    %v219 = vadd.f32 %v206, 1.0
    %v220 = vadd.f32 %v208, 1.0
    %v221 = vadd.f32 %v210, 1.0
    %v222 = vadd.f32 %v212, 1.0
    %v223 = vadd.f32 %v214, 1.0
    %v224 = vadd.f32 %v216, 1.0
    %v225 = vadd.f32 %v218, 1.0
    %v226 = vrcp.pop %v219
    %v227 = vmul.f32 1.0, %v226
    %v228 = vrcp.pop %v220
    %v229 = vmul.f32 1.0, %v228
    %v230 = vrcp.pop %v221
    %v231 = vmul.f32 1.0, %v230
    %v232 = vrcp.pop %v222
    %v233 = vmul.f32 1.0, %v232
    %v234 = vrcp.pop %v223
    %v235 = vmul.f32 1.0, %v234
    %v236 = vrcp.pop %v224
    %v237 = vmul.f32 1.0, %v236
    %v238 = vrcp.pop %v225
    %v239 = vmul.f32 1.0, %v238
    %v240 = vld [vmem:[%s3] sm:$0xf]
    %v241 = vld [vmem:[%s4] sm:$0xf]
    %243 = vset.pattern.permute.xlu0 0
    %244 = vperm.xlu0 %243, %v241
    %v245 = vpop.permute.xlu0 %244
    %vm247 = vcmask 408576
    %v249 = vsel %vm247, %v240, 0
    %vm251 = vcmask 1041408
    %v253 = vsel %vm251, %v239, 0
    %255 = vmatprep.subr.mxu0 0.0
    %256 = vmatpush1.msra.mxu0 0.0
    %257 = vmatprep.subr.mxu0 0.0
    %258 = vmatpush1.msra.mxu0 0.0
    %259 = vmatprep.subr.mxu0 0.0
    %260 = vmatpush1.msra.mxu0 0.0
    %261 = vmatprep.subr.mxu0 0.0
    %262 = vmatpush1.msra.mxu0 0.0
    %263 = vmatprep.subr.mxu0 0.0
    %264 = vmatpush1.msra.mxu0 0.0
    %265 = vmatprep.subr.mxu0 0.0
    %266 = vmatpush1.msra.mxu0 0.0
    %267 = vmatprep.subr.mxu0 0.0
    %268 = vmatpush1.msra.mxu0 0.0
    %269 = vmatprep.subr.mxu0 0.0
    %270 = vmatpush1.msra.mxu0 0.0
    %271 = vmatprep.subr.mxu0 0.0
    %272 = vmatpush1.msra.mxu0 0.0
    %273 = vmatprep.subr.mxu0 0.0
    %274 = vmatpush1.msra.mxu0 %v253
    %275 = vmatprep.subr.mxu0 0.0
    %276 = vmatpush1.msra.mxu0 %v237
    %277 = vmatprep.subr.mxu0 0.0
    %278 = vmatpush1.msra.mxu0 %v235
    %279 = vmatprep.subr.mxu0 0.0
    %280 = vmatpush1.msra.mxu0 %v233
    %281 = vmatprep.subr.mxu0 0.0
    %282 = vmatpush1.msra.mxu0 %v231
    %283 = vmatprep.subr.mxu0 0.0
    %284 = vmatpush1.msra.mxu0 %v229
    %285 = vmatprep.subr.mxu0 0.0
    %286 = vmatpush1.msra.mxu0 %v227
    %287 = vmatprep.subr.mxu0 0.0
    %288 = vmatpush2.msra.mxu0 0.0
    %289 = vmatprep.subr.mxu0 0.0
    %290 = vmatpush2.msra.mxu0 0.0
    %291 = vmatprep.subr.mxu0 0.0
    %292 = vmatpush2.msra.mxu0 0.0
    %293 = vmatprep.subr.mxu0 0.0
    %294 = vmatpush2.msra.mxu0 0.0
    %295 = vmatprep.subr.mxu0 0.0
    %296 = vmatpush2.msra.mxu0 0.0
    %297 = vmatprep.subr.mxu0 0.0
    %298 = vmatpush2.msra.mxu0 0.0
    %299 = vmatprep.subr.mxu0 0.0
    %300 = vmatpush2.msra.mxu0 0.0
    %301 = vmatprep.subr.mxu0 0.0
    %302 = vmatpush2.msra.mxu0 0.0
    %303 = vmatprep.subr.mxu0 0.0
    %304 = vmatpush2.msra.mxu0 0.0
    %305 = vmatprep.subr.mxu0 0.0
    %306 = vmatpush2.msra.mxu0 0.0
    %307 = vmatprep.subr.mxu0 0.0
    %308 = vmatpush2.msra.mxu0 0.0
    %309 = vmatprep.subr.mxu0 0.0
    %310 = vmatpush2.msra.mxu0 0.0
    %311 = vmatprep.subr.mxu0 0.0
    %312 = vmatpush2.msra.mxu0 0.0
    %313 = vmatprep.subr.mxu0 0.0
    %314 = vmatpush2.msra.mxu0 0.0
    %315 = vmatprep.subr.mxu0 0.0
    %316 = vmatpush2.msra.mxu0 0.0
    %317 = vmatprep.subr.mxu0 0.0
    %318 = vmatpush2.msra.mxu0 0.0
    %319 = vmatprep.mubr.f32.mxu0 0.0
    %320 = vmatmul.mubr.f32.gmra.mxu0 %v249
    %v321 = vpop.f32.mrf.mxu0
    %v322 = vadd.f32 %v245, %v321
    %v323 = vpop.f32.mrf.mxu0
    %324 = vdwg.mxu0
    %vm325 = vcmask 60416
    %326 = vst.msk [vmem:[#allocation2] sm:$0xf] %vm325, %v322
    // Predicated region
    $region22: #{tpu_custom_call.1} parent=1 // pred_check
      _
    $region23: #{tpu_custom_call.1} parent=1 // pred_check_branch
      %328 = sbr.rel (0) target = $region25
    $region24: #{tpu_custom_call.1} parent=1 // pred_region
      %s330 = ssub.s32 64, 64
      %331 = vsyncadd [#allocation3], %s330
      %s333 = sshll.u32 [#allocation2], 4
      %s334 = int_to_ptr.vmem [resolvable:$true] %s333
      %336 = dma.vmem_to_hbm [thread:$0]  %s334, 64, %s5, [#allocation3]
    $region25: #{tpu_custom_call.1} parent=1 // pred_fallthru
      _
    // Predicated region
    $region26: #{tpu_custom_call.1} parent=1 // pred_check
      _
    $region27: #{tpu_custom_call.1} parent=1 // pred_check_branch
      %338 = sbr.rel (0) target = $region29
    $region28: #{tpu_custom_call.1} parent=1 // pred_region
      %339 = dma.done [#allocation3], 64
    $region29: #{tpu_custom_call.1} parent=1 // pred_fallthru
      _
    %340 = vsyncpa [#allocation3], 1

</llo_original>
